<compile_context>
chip_gen: v6e
topology: v6e:2x2x1
jax: 0.10.0
libtpu: 0.0.40
codegen_flags: <defaults>
</compile_context>

<pallas_src>
import jax
import jax.numpy as jnp
from jax.experimental import pallas as pl
from jax.experimental.pallas import tpu as pltpu

IN_F = 10
HID_F = 84
OUT_F = 10
PAD = 128          # lane width used for the fc1 output / hidden activation
MAX_TILE_B = 1024  # max batch rows per grid step


def _mlp_kernel(x_ref, w1_ref, b1_ref, w23_ref, b23_ref, o_ref):
    # x tile is logically (TB, 10); Mosaic masks the K=10 contraction.
    x = x_ref[...]
    # fc1 (+ bias, ReLU): hidden expanded to a full 128-lane tile; the padded
    # out-feature lanes are exact zeros (zero weight cols, zero bias, relu(0)=0).
    h = jnp.dot(x, w1_ref[...], preferred_element_type=jnp.float32) + b1_ref[...]
    h = jnp.maximum(h, 0.0)                                  # (TB, 128)
    # folded fc2.fc3: padded hidden lanes hit zero rows of w23 -> contribute 0.
    y = jnp.dot(h, w23_ref[...], preferred_element_type=jnp.float32) + b23_ref[...]
    o_ref[...] = y.astype(o_ref.dtype)                       # (TB, 10)


def fold_and_pad_params(w1_t, b1, w2_t, b2, w3_t, b3):
    """Fold fc2.fc3 (no nonlinearity between) and pad only fc1's out-features."""
    w23 = w2_t @ w3_t                      # (10, 10)
    b23 = b2 @ w3_t + b3                   # (1, 10)
    w1p = jnp.zeros((IN_F, PAD), jnp.float32).at[:, :IN_F].set(w1_t)   # (10, 128)
    b1p = jnp.zeros((1, PAD), jnp.float32).at[:, :IN_F].set(b1)        # (1, 128)
    w23p = jnp.zeros((PAD, OUT_F), jnp.float32).at[:IN_F, :].set(w23)  # (128, 10)
    b23p = b23                                                         # (1, 10)
    return w1p, b1p, w23p, b23p


def _choose_batch_tiling(batch):
    """tile_b (multiple of 8, <= MAX_TILE_B) with a nearly-full last tile; force
    >= 2 grid steps for larger batches so v7x's second TensorCore gets work."""
    def ceil_to(n, m):
        return ((n + m - 1) // m) * m

    n_steps = max(1, (batch + MAX_TILE_B - 1) // MAX_TILE_B)
    if batch >= 64 and n_steps < 2:
        n_steps = 2
    tile_b = ceil_to((batch + n_steps - 1) // n_steps, 8)
    b_pad = tile_b * n_steps
    return tile_b, b_pad, n_steps


@jax.jit
def mlp_forward(x, w1p, b1p, w23p, b23p):
    """x: (B, 10) float32 -> (B, 10) float32 using pre-folded / padded params."""
    batch = x.shape[0]
    tile_b, b_pad, n_steps = _choose_batch_tiling(batch)

    if b_pad != batch:
        xp = jnp.zeros((b_pad, IN_F), x.dtype).at[:batch].set(x)
    else:
        xp = x

    out = pl.pallas_call(
        _mlp_kernel,
        out_shape=jax.ShapeDtypeStruct((b_pad, OUT_F), jnp.float32),
        grid_spec=pltpu.PrefetchScalarGridSpec(
            num_scalar_prefetch=0,
            grid=(n_steps,),
            in_specs=[
                pl.BlockSpec((tile_b, IN_F), lambda i: (i, 0)),   # x tile (narrow)
                pl.BlockSpec((IN_F, PAD), lambda i: (0, 0)),      # w1 (constant)
                pl.BlockSpec((1, PAD), lambda i: (0, 0)),         # b1 (constant)
                pl.BlockSpec((PAD, OUT_F), lambda i: (0, 0)),     # folded w23
                pl.BlockSpec((1, OUT_F), lambda i: (0, 0)),       # folded b23
            ],
            out_specs=pl.BlockSpec((tile_b, OUT_F), lambda i: (i, 0)),
        ),
        compiler_params=pltpu.CompilerParams(
            dimension_semantics=("parallel",)),
    )(xp, w1p, b1p, w23p, b23p)

    if b_pad != batch:
        out = out[:batch]
    return out


def init_params(key):
    """Deterministic init mimicking nn.Linear default (uniform +-1/sqrt(fan_in))."""
    ks = jax.random.split(key, 6)

    def linear(kw, kb, fan_in, fan_out):
        bound = 1.0 / jnp.sqrt(fan_in)
        w = jax.random.uniform(kw, (fan_out, fan_in), jnp.float32, -bound, bound)
        b = jax.random.uniform(kb, (fan_out,), jnp.float32, -bound, bound)
        # store transposed weight (in, out) and 2D bias (1, out)
        return w.T, b.reshape(1, fan_out)

    w1_t, b1 = linear(ks[0], ks[1], IN_F, IN_F)
    w2_t, b2 = linear(ks[2], ks[3], IN_F, HID_F)
    w3_t, b3 = linear(ks[4], ks[5], HID_F, OUT_F)
    return w1_t, b1, w2_t, b2, w3_t, b3


def reference_forward(x, w1_t, b1, w2_t, b2, w3_t, b3):
    h = jnp.maximum(x @ w1_t + b1, 0.0)
    h = h @ w2_t + b2
    return h @ w3_t + b3


if __name__ == "__main__":
    key = jax.random.PRNGKey(0)
    k_x, k_p = jax.random.split(key)

    params = init_params(k_p)
    folded = fold_and_pad_params(*params)

    # Small demo batch (single grid step).
    batch = 8
    x = jax.random.normal(k_x, (batch, IN_F), dtype=jnp.float32)
    out = jax.block_until_ready(mlp_forward(x, *folded))
    ref = reference_forward(x, *params)
    assert out.shape == (batch, OUT_F), out.shape
    assert jnp.allclose(out, ref, atol=1e-4, rtol=1e-4), "mismatch vs reference"

    # Ragged batch exercising multi-step grid + batch-row padding path.
    batch2 = 200
    x2 = jax.random.normal(k_x, (batch2, IN_F), dtype=jnp.float32)
    out2 = jax.block_until_ready(mlp_forward(x2, *folded))
    ref2 = reference_forward(x2, *params)
    assert out2.shape == (batch2, OUT_F), out2.shape
    assert jnp.allclose(out2, ref2, atol=1e-4, rtol=1e-4), "mismatch vs reference (ragged)"

    print("KERNEL_OK")
</pallas_src>

<mosaic_0001>
module attributes {stable_mosaic.version = 11 : i64} {
  func.func @_mlp_kernel(%arg0: i32, %arg1: memref<8x10xf32, #tpu.memory_space<vmem>>, %arg2: memref<10x128xf32, #tpu.memory_space<vmem>>, %arg3: memref<1x128xf32, #tpu.memory_space<vmem>>, %arg4: memref<128x10xf32, #tpu.memory_space<vmem>>, %arg5: memref<1x10xf32, #tpu.memory_space<vmem>>, %arg6: memref<8x10xf32, #tpu.memory_space<vmem>>) attributes {dimension_semantics = [#tpu.dimension_semantics<parallel>], iteration_bounds = array<i64: 1>, scalar_prefetch = 0 : i64, scratch_operands = 0 : i64, tpu.core_type = #tpu.core_type<tc>, window_params = [{transform_indices = @transform_0, window_bounds = array<i64: 8, 10>}, {pipeline_mode = #tpu.pipeline_mode<synchronous>, transform_indices = @transform_1, window_bounds = array<i64: 10, 128>}, {pipeline_mode = #tpu.pipeline_mode<synchronous>, transform_indices = @transform_2, window_bounds = array<i64: 1, 128>}, {pipeline_mode = #tpu.pipeline_mode<synchronous>, transform_indices = @transform_3, window_bounds = array<i64: 128, 10>}, {pipeline_mode = #tpu.pipeline_mode<synchronous>, transform_indices = @transform_4, window_bounds = array<i64: 1, 10>}, {transform_indices = @transform_5, window_bounds = array<i64: 8, 10>}]} {
    %c0 = arith.constant 0 : index
    %c0_0 = arith.constant 0 : index
    %0 = vector.load %arg1[%c0, %c0_0] : memref<8x10xf32, #tpu.memory_space<vmem>>, vector<8x10xf32>
    %c0_1 = arith.constant 0 : index
    %c0_2 = arith.constant 0 : index
    %1 = vector.load %arg2[%c0_1, %c0_2] : memref<10x128xf32, #tpu.memory_space<vmem>>, vector<10x128xf32>
    %cst = arith.constant dense<0.000000e+00> : vector<8x128xf32>
    %2 = tpu.matmul %0, %1, %cst {dimension_numbers = #tpu.dot_dimension_numbers<[1], [0], [0], [1], [0, 0, 1, 1], [], []>} : vector<8x10xf32>, vector<10x128xf32>, vector<8x128xf32> -> vector<8x128xf32>
    %c0_3 = arith.constant 0 : index
    %c0_4 = arith.constant 0 : index
    %3 = vector.load %arg3[%c0_3, %c0_4] : memref<1x128xf32, #tpu.memory_space<vmem>>, vector<1x128xf32>
    %4 = vector.broadcast %3 : vector<1x128xf32> to vector<8x128xf32>
    %5 = arith.addf %2, %4 : vector<8x128xf32>
    %cst_5 = arith.constant 0.000000e+00 : f32
    %6 = vector.broadcast %cst_5 : f32 to vector<8x128xf32>
    %7 = arith.maximumf %5, %6 : vector<8x128xf32>
    %c0_6 = arith.constant 0 : index
    %c0_7 = arith.constant 0 : index
    %8 = vector.load %arg4[%c0_6, %c0_7] : memref<128x10xf32, #tpu.memory_space<vmem>>, vector<128x10xf32>
    %cst_8 = arith.constant dense<0.000000e+00> : vector<8x10xf32>
    %9 = tpu.matmul %7, %8, %cst_8 {dimension_numbers = #tpu.dot_dimension_numbers<[1], [0], [0], [1], [0, 0, 1, 1], [], []>} : vector<8x128xf32>, vector<128x10xf32>, vector<8x10xf32> -> vector<8x10xf32>
    %c0_9 = arith.constant 0 : index
    %c0_10 = arith.constant 0 : index
    %10 = vector.load %arg5[%c0_9, %c0_10] : memref<1x10xf32, #tpu.memory_space<vmem>>, vector<1x10xf32>
    %11 = vector.broadcast %10 : vector<1x10xf32> to vector<8x10xf32>
    %12 = arith.addf %9, %11 : vector<8x10xf32>
    %c0_11 = arith.constant 0 : index
    %c0_12 = arith.constant 0 : index
    %13 = vector.load %arg6[%c0_11, %c0_12] : memref<8x10xf32, #tpu.memory_space<vmem>>, vector<8x10xf32>
    tpu.vector_store %arg6[%c0_11, %c0_12], %12 {strides = array<i32>} : memref<8x10xf32, #tpu.memory_space<vmem>>, vector<8x10xf32>,
    return
  }
  func.func @transform_0(%arg0: i32) -> (i32, i32) {
    %c0_i32 = arith.constant 0 : i32
    %c0_i32_0 = arith.constant 0 : i32
    return %arg0, %c0_i32 : i32, i32
  }
  func.func @transform_1(%arg0: i32) -> (i32, i32) {
    %c0_i32 = arith.constant 0 : i32
    %c0_i32_0 = arith.constant 0 : i32
    %c0_i32_1 = arith.constant 0 : i32
    return %c0_i32, %c0_i32_0 : i32, i32
  }
  func.func @transform_2(%arg0: i32) -> (i32, i32) {
    %c0_i32 = arith.constant 0 : i32
    %c0_i32_0 = arith.constant 0 : i32
    %c0_i32_1 = arith.constant 0 : i32
    return %c0_i32, %c0_i32_0 : i32, i32
  }
  func.func @transform_3(%arg0: i32) -> (i32, i32) {
    %c0_i32 = arith.constant 0 : i32
    %c0_i32_0 = arith.constant 0 : i32
    %c0_i32_1 = arith.constant 0 : i32
    return %c0_i32, %c0_i32_0 : i32, i32
  }
  func.func @transform_4(%arg0: i32) -> (i32, i32) {
    %c0_i32 = arith.constant 0 : i32
    %c0_i32_0 = arith.constant 0 : i32
    %c0_i32_1 = arith.constant 0 : i32
    return %c0_i32, %c0_i32_0 : i32, i32
  }
  func.func @transform_5(%arg0: i32) -> (i32, i32) {
    %c0_i32 = arith.constant 0 : i32
    %c0_i32_0 = arith.constant 0 : i32
    return %arg0, %c0_i32 : i32, i32
  }
}

</mosaic_0001>

<llo_original>
// kernel: mlp_forward.1
$region0: #{mlp_forward.1}
  #allocation0 [shape = 'u32[]', space=smem, size = 0x4, offset = 0x4, fixed_abs, tag = 'smem constant byte address 0x4 - core index']
  #allocation1 [shape = 'u32[144,128]{1,0:T(1,128)}', space=vmem, size = 0x12000, scoped, tag = 'internal scratch']
  %s0 = inlined_call_operand.vmem [shape: f32[8,10], index: 0, kind: input, shape index: {}]
  %s1 = inlined_call_operand.vmem [shape: f32[10,128], index: 1, kind: input, shape index: {}]
  %s2 = inlined_call_operand.vmem [shape: f32[1,128], index: 2, kind: input, shape index: {}]
  %s3 = inlined_call_operand.vmem [shape: f32[128,10], index: 3, kind: input, shape index: {}]
  %s4 = inlined_call_operand.vmem [shape: f32[1,10], index: 4, kind: input, shape index: {}]
  %s5 = inlined_call_operand.hbm [shape: f32[8,10], index: 5, kind: output, shape index: {}]
  %s6 = sld [smem:[#allocation0]]
  $region30: #{mlp_forward.1} parent=0
    _
  %s8 = ssub.s32 1, %s6
  %s9 = scalar_select 0, %s8, %s6
  $region1: #{mlp_forward.1} parent=0
    #allocation2 [shape = 'u8[4096]{0}', space=vmem, size = 0x1000, scoped, tag = 'output window, operand 0, single buffered']
    #allocation3 [shape = 's32[1]{0}', space=sflag, size = 0x4, scoped, tag = 'scoped memory for mlp_forward.1']
    %10 = vsyncpa [#allocation3], 0
    // Predicated region
    $region2: #{mlp_forward.1} parent=1 // pred_check
      _
    $region3: #{mlp_forward.1} parent=1 // pred_check_branch
      %12 = sbr.rel (0) target = $region5
    $region4: #{mlp_forward.1} parent=1 // pred_region
      _
    $region5: #{mlp_forward.1} parent=1 // pred_fallthru
      _
    // Predicated region
    $region6: #{mlp_forward.1} parent=1 // pred_check
      _
    $region7: #{mlp_forward.1} parent=1 // pred_check_branch
      %14 = sbr.rel (0) target = $region9
    $region8: #{mlp_forward.1} parent=1 // pred_region
      _
    $region9: #{mlp_forward.1} parent=1 // pred_fallthru
      _
    // Predicated region
    $region10: #{mlp_forward.1} parent=1 // pred_check
      _
    $region11: #{mlp_forward.1} parent=1 // pred_check_branch
      %16 = sbr.rel (0) target = $region13
    $region12: #{mlp_forward.1} parent=1 // pred_region
      _
    $region13: #{mlp_forward.1} parent=1 // pred_fallthru
      _
    // Predicated region
    $region14: #{mlp_forward.1} parent=1 // pred_check
      _
    $region15: #{mlp_forward.1} parent=1 // pred_check_branch
      %18 = sbr.rel (0) target = $region17
    $region16: #{mlp_forward.1} parent=1 // pred_region
      _
    $region17: #{mlp_forward.1} parent=1 // pred_fallthru
      _
    // Predicated region
    $region18: #{mlp_forward.1} parent=1 // pred_check
      _
    $region19: #{mlp_forward.1} parent=1 // pred_check_branch
      %20 = sbr.rel (0) target = $region21
    $region20: #{mlp_forward.1} parent=1 // pred_region
      _
    $region21: #{mlp_forward.1} parent=1 // pred_fallthru
      _
    %v21 = vld [vmem:[%s0] sm:$0xff]
    %v22 = vld [vmem:[%s1] sm:$0xff]
    %v23 = vld [vmem:[%s1 + $0x8] sm:$0x3]
    %v24 = vld [vmem:[%s2] sm:$0x1]
    %v26 = vlaneseq
    %v27 = vshrl.u32 %v26, 7
    %v28 = vsub.s32 0, %v27
    %v29 = vrot.slane %v24, %v28
    %vm31 = vcmask 80896
    %v33 = vsel %vm31, %v21, 0
    %vm35 = vcmask 1041408
    %v37 = vsel %vm35, %v23, 0
    %39 = vmatprep.subr.mxu0 0.0
    %40 = vmatpush1.msra.mxu0 0.0
    %41 = vmatprep.subr.mxu0 0.0
    %42 = vmatpush1.msra.mxu0 0.0
    %43 = vmatprep.subr.mxu0 0.0
    %44 = vmatpush1.msra.mxu0 0.0
    %45 = vmatprep.subr.mxu0 0.0
    %46 = vmatpush1.msra.mxu0 0.0
    %47 = vmatprep.subr.mxu0 0.0
    %48 = vmatpush1.msra.mxu0 0.0
    %49 = vmatprep.subr.mxu0 0.0
    %50 = vmatpush1.msra.mxu0 0.0
    %51 = vmatprep.subr.mxu0 0.0
    %52 = vmatpush1.msra.mxu0 0.0
    %53 = vmatprep.subr.mxu0 0.0
    %54 = vmatpush1.msra.mxu0 0.0
    %55 = vmatprep.subr.mxu0 0.0
    %56 = vmatpush1.msra.mxu0 0.0
    %57 = vmatprep.subr.mxu0 0.0
    %58 = vmatpush1.msra.mxu0 0.0
    %59 = vmatprep.subr.mxu0 0.0
    %60 = vmatpush1.msra.mxu0 0.0
    %61 = vmatprep.subr.mxu0 0.0
    %62 = vmatpush1.msra.mxu0 0.0
    %63 = vmatprep.subr.mxu0 0.0
    %64 = vmatpush1.msra.mxu0 0.0
    %65 = vmatprep.subr.mxu0 0.0
    %66 = vmatpush1.msra.mxu0 0.0
    %67 = vmatprep.subr.mxu0 0.0
    %68 = vmatpush1.msra.mxu0 %v37
    %69 = vmatprep.subr.mxu0 0.0
    %70 = vmatpush1.msra.mxu0 %v22
    %71 = vmatprep.subr.mxu0 0.0
    %72 = vmatpush2.msra.mxu0 0.0
    %73 = vmatprep.subr.mxu0 0.0
    %74 = vmatpush2.msra.mxu0 0.0
    %75 = vmatprep.subr.mxu0 0.0
    %76 = vmatpush2.msra.mxu0 0.0
    %77 = vmatprep.subr.mxu0 0.0
    %78 = vmatpush2.msra.mxu0 0.0
    %79 = vmatprep.subr.mxu0 0.0
    %80 = vmatpush2.msra.mxu0 0.0
    %81 = vmatprep.subr.mxu0 0.0
    %82 = vmatpush2.msra.mxu0 0.0
    %83 = vmatprep.subr.mxu0 0.0
    %84 = vmatpush2.msra.mxu0 0.0
    %85 = vmatprep.subr.mxu0 0.0
    %86 = vmatpush2.msra.mxu0 0.0
    %87 = vmatprep.subr.mxu0 0.0
    %88 = vmatpush2.msra.mxu0 0.0
    %89 = vmatprep.subr.mxu0 0.0
    %90 = vmatpush2.msra.mxu0 0.0
    %91 = vmatprep.subr.mxu0 0.0
    %92 = vmatpush2.msra.mxu0 0.0
    %93 = vmatprep.subr.mxu0 0.0
    %94 = vmatpush2.msra.mxu0 0.0
    %95 = vmatprep.subr.mxu0 0.0
    %96 = vmatpush2.msra.mxu0 0.0
    %97 = vmatprep.subr.mxu0 0.0
    %98 = vmatpush2.msra.mxu0 0.0
    %99 = vmatprep.subr.mxu0 0.0
    %100 = vmatpush2.msra.mxu0 0.0
    %101 = vmatprep.subr.mxu0 0.0
    %102 = vmatpush2.msra.mxu0 0.0
    %103 = vmatprep.mubr.f32.mxu0 0.0
    %104 = vmatmul.mubr.f32.gmra.mxu0 %v33
    %v105 = vpop.f32.mrf.mxu0
    %v106 = vadd.f32 %v29, %v105
    %v107 = vpop.f32.mrf.mxu0
    %108 = vdwg.mxu0
    %v109 = vmax.f32 %v106, 0.0
    %v110 = vld [vmem:[%s3] sm:$0xff]
    %v111 = vld [vmem:[%s3 + $0x8] sm:$0xff]
    %v112 = vld [vmem:[%s3 + $0x10] sm:$0xff]
    %v113 = vld [vmem:[%s3 + $0x18] sm:$0xff]
    %v114 = vld [vmem:[%s3 + $0x20] sm:$0xff]
    %v115 = vld [vmem:[%s3 + $0x28] sm:$0xff]
    %v116 = vld [vmem:[%s3 + $0x30] sm:$0xff]
    %v117 = vld [vmem:[%s3 + $0x38] sm:$0xff]
    %v118 = vld [vmem:[%s3 + $0x40] sm:$0xff]
    %v119 = vld [vmem:[%s3 + $0x48] sm:$0xff]
    %v120 = vld [vmem:[%s3 + $0x50] sm:$0xff]
    %v121 = vld [vmem:[%s3 + $0x58] sm:$0xff]
    %v122 = vld [vmem:[%s3 + $0x60] sm:$0xff]
    %v123 = vld [vmem:[%s3 + $0x68] sm:$0xff]
    %v124 = vld [vmem:[%s3 + $0x70] sm:$0xff]
    %v125 = vld [vmem:[%s3 + $0x78] sm:$0xff]
    %v126 = vld [vmem:[%s4] sm:$0x1]
    %v128 = vlaneseq
    %v129 = vshrl.u32 %v128, 7
    %v130 = vsub.s32 0, %v129
    %v131 = vrot.slane %v126, %v130
    %133 = vmatprep.subr.mxu0 0.0
    %134 = vmatpush1.msra.mxu0 %v125
    %135 = vmatprep.subr.mxu0 0.0
    %136 = vmatpush1.msra.mxu0 %v124
    %137 = vmatprep.subr.mxu0 0.0
    %138 = vmatpush1.msra.mxu0 %v123
    %139 = vmatprep.subr.mxu0 0.0
    %140 = vmatpush1.msra.mxu0 %v122
    %141 = vmatprep.subr.mxu0 0.0
    %142 = vmatpush1.msra.mxu0 %v121
    %143 = vmatprep.subr.mxu0 0.0
    %144 = vmatpush1.msra.mxu0 %v120
    %145 = vmatprep.subr.mxu0 0.0
    %146 = vmatpush1.msra.mxu0 %v119
    %147 = vmatprep.subr.mxu0 0.0
    %148 = vmatpush1.msra.mxu0 %v118
    %149 = vmatprep.subr.mxu0 0.0
    %150 = vmatpush1.msra.mxu0 %v117
    %151 = vmatprep.subr.mxu0 0.0
    %152 = vmatpush1.msra.mxu0 %v116
    %153 = vmatprep.subr.mxu0 0.0
    %154 = vmatpush1.msra.mxu0 %v115
    %155 = vmatprep.subr.mxu0 0.0
    %156 = vmatpush1.msra.mxu0 %v114
    %157 = vmatprep.subr.mxu0 0.0
    %158 = vmatpush1.msra.mxu0 %v113
    %159 = vmatprep.subr.mxu0 0.0
    %160 = vmatpush1.msra.mxu0 %v112
    %161 = vmatprep.subr.mxu0 0.0
    %162 = vmatpush1.msra.mxu0 %v111
    %163 = vmatprep.subr.mxu0 0.0
    %164 = vmatpush1.msra.mxu0 %v110
    %165 = vmatprep.subr.mxu0 0.0
    %166 = vmatpush2.msra.mxu0 0.0
    %167 = vmatprep.subr.mxu0 0.0
    %168 = vmatpush2.msra.mxu0 0.0
    %169 = vmatprep.subr.mxu0 0.0
    %170 = vmatpush2.msra.mxu0 0.0
    %171 = vmatprep.subr.mxu0 0.0
    %172 = vmatpush2.msra.mxu0 0.0
    %173 = vmatprep.subr.mxu0 0.0
    %174 = vmatpush2.msra.mxu0 0.0
    %175 = vmatprep.subr.mxu0 0.0
    %176 = vmatpush2.msra.mxu0 0.0
    %177 = vmatprep.subr.mxu0 0.0
    %178 = vmatpush2.msra.mxu0 0.0
    %179 = vmatprep.subr.mxu0 0.0
    %180 = vmatpush2.msra.mxu0 0.0
    %181 = vmatprep.subr.mxu0 0.0
    %182 = vmatpush2.msra.mxu0 0.0
    %183 = vmatprep.subr.mxu0 0.0
    %184 = vmatpush2.msra.mxu0 0.0
    %185 = vmatprep.subr.mxu0 0.0
    %186 = vmatpush2.msra.mxu0 0.0
    %187 = vmatprep.subr.mxu0 0.0
    %188 = vmatpush2.msra.mxu0 0.0
    %189 = vmatprep.subr.mxu0 0.0
    %190 = vmatpush2.msra.mxu0 0.0
    %191 = vmatprep.subr.mxu0 0.0
    %192 = vmatpush2.msra.mxu0 0.0
    %193 = vmatprep.subr.mxu0 0.0
    %194 = vmatpush2.msra.mxu0 0.0
    %195 = vmatprep.subr.mxu0 0.0
    %196 = vmatpush2.msra.mxu0 0.0
    %197 = vmatprep.mubr.f32.mxu0 0.0
    %198 = vmatmul.mubr.f32.gmra.mxu0 %v109
    %v199 = vpop.f32.mrf.mxu0
    %v200 = vadd.f32 %v131, %v199
    %v201 = vpop.f32.mrf.mxu0
    %202 = vdwg.mxu0
    %203 = vst.msk [vmem:[#allocation2] sm:$0xff] %vm31, %v200
    // Predicated region
    $region22: #{mlp_forward.1} parent=1 // pred_check
      _
    $region23: #{mlp_forward.1} parent=1 // pred_check_branch
      %205 = sbr.rel (0) target = $region25
    $region24: #{mlp_forward.1} parent=1 // pred_region
      %s207 = ssub.s32 128, 128
      %208 = vsyncadd [#allocation3], %s207
      %s210 = sshll.u32 [#allocation2], 4
      %s211 = int_to_ptr.vmem [resolvable:$true] %s210
      %213 = dma.vmem_to_hbm [thread:$0]  %s211, 128, %s5, [#allocation3]
    $region25: #{mlp_forward.1} parent=1 // pred_fallthru
      _
    // Predicated region
    $region26: #{mlp_forward.1} parent=1 // pred_check
      _
    $region27: #{mlp_forward.1} parent=1 // pred_check_branch
      %215 = sbr.rel (0) target = $region29
    $region28: #{mlp_forward.1} parent=1 // pred_region
      %216 = dma.done [#allocation3], 128
    $region29: #{mlp_forward.1} parent=1 // pred_fallthru
      _
    %217 = vsyncpa [#allocation3], 1

</llo_original>
